<compile_context>
chip_gen: v6e
topology: v6e:2x2x1
jax: 0.10.0
libtpu: 0.0.40
codegen_flags: <defaults>
</compile_context>

<pallas_src>
import math

import jax
import jax.numpy as jnp
from jax.experimental import pallas as pl
from jax.experimental.pallas import tpu as pltpu


def _softplus_kernel(p_ref, o_ref):
    # p_ref: (1, 1) float32 in SMEM  (scalar path, no padded vector DMA in)
    # o_ref: (1, 1) float32 in VMEM
    x = p_ref[0, 0]                              # scalar read from SMEM
    xv = jnp.full((1, 1), x, dtype=jnp.float32)  # splat to vector path for EUP
    # Numerically stable softplus: max(x, 0) + log1p(exp(-|x|)).
    # Matches F.softplus(beta=1, threshold=20): for x > 20 the log1p term is
    # < 2e-9, i.e. below f32 resolution relative to x.
    o_ref[...] = jnp.maximum(xv, 0.0) + jnp.log1p(jnp.exp(-jnp.abs(xv)))


def _forward_pallas(param_1x1: jax.Array) -> jax.Array:
    """softplus(param) via Pallas. `param_1x1` is the (1,1) f32 parameter."""
    return pl.pallas_call(
        _softplus_kernel,
        out_shape=jax.ShapeDtypeStruct((1, 1), jnp.float32),
        in_specs=[pl.BlockSpec(memory_space=pltpu.SMEM)],
        out_specs=pl.BlockSpec(memory_space=pltpu.VMEM),
    )(param_1x1)


# --- learnable forward with gradients (custom VJP: d softplus/dx = sigmoid) ---
@jax.custom_vjp
def learnable_kl_reg_forward(param_1x1: jax.Array) -> jax.Array:
    return _forward_pallas(param_1x1)


def _fwd(param_1x1):
    return _forward_pallas(param_1x1), param_1x1


def _bwd(param_1x1, g):
    # Backward is one sigmoid — cheaper as fused XLA than another kernel launch.
    return (g * jax.nn.sigmoid(param_1x1),)


learnable_kl_reg_forward.defvjp(_fwd, _bwd)


def inverse_softplus(x: float) -> float:
    # Same as the reference implementation: log(exp(x) - 1).
    return float(math.log(math.expm1(x)))


if __name__ == "__main__":
    # Deterministic init_value from PRNGKey(0); the module has no tensor
    # inputs — its only state is the scalar parameter.
    key = jax.random.PRNGKey(0)
    init_value = float(
        jax.random.uniform(key, (), minval=0.5, maxval=2.0, dtype=jnp.float32)
    )

    # Parameter initialization exactly as LearnableKLReg.__init__ does,
    # stored as (1,1) f32 so the forward pass needs no reshape plumbing.
    pre_value = inverse_softplus(init_value)
    param = jnp.full((1, 1), pre_value, dtype=jnp.float32)

    # Forward pass (eager; in real use nest this inside the caller's jit).
    result = jax.block_until_ready(learnable_kl_reg_forward(param))

    # Reference check: softplus(inverse_softplus(v)) == v.
    ref = float(jnp.log1p(jnp.exp(jnp.float32(pre_value))))
    assert result.shape == (1, 1)
    assert result.dtype == jnp.float32
    got = float(result[0, 0])
    assert abs(got - ref) < 1e-5
    assert abs(got - init_value) < 1e-4

    # Gradient check: learnable parameter must receive d softplus/dx = sigmoid.
    grad = jax.block_until_ready(
        jax.grad(lambda p: learnable_kl_reg_forward(p)[0, 0])(param)
    )
    grad_ref = float(jax.nn.sigmoid(jnp.float32(pre_value)))
    assert grad.shape == (1, 1)
    assert abs(float(grad[0, 0]) - grad_ref) < 1e-5

    print("KERNEL_OK")
</pallas_src>

<mosaic_0001>
module attributes {stable_mosaic.version = 11 : i64} {
  func.func @_softplus_kernel(%arg0: memref<1x1xf32, #tpu.memory_space<smem>>, %arg1: memref<1x1xf32, #tpu.memory_space<vmem>>) attributes {dimension_semantics = [], scalar_prefetch = 0 : i64, scratch_operands = 0 : i64, tpu.core_type = #tpu.core_type<tc>} {
    %c0 = arith.constant 0 : index
    %c0_0 = arith.constant 0 : index
    %0 = memref.load %arg0[%c0, %c0_0] : memref<1x1xf32, #tpu.memory_space<smem>>
    %1 = vector.broadcast %0 : f32 to vector<1x1xf32>
    %cst = arith.constant 0.000000e+00 : f32
    %2 = vector.broadcast %cst : f32 to vector<1x1xf32>
    %3 = arith.maximumf %1, %2 : vector<1x1xf32>
    %4 = math.absf %1 : vector<1x1xf32>
    %cst_1 = arith.constant 0.000000e+00 : f32
    %5 = vector.broadcast %cst_1 : f32 to vector<1x1xf32>
    %6 = arith.subf %5, %4 : vector<1x1xf32>
    %7 = math.exp %6 : vector<1x1xf32>
    %8 = math.log1p %7 : vector<1x1xf32>
    %9 = arith.addf %3, %8 : vector<1x1xf32>
    %c0_2 = arith.constant 0 : index
    %c0_3 = arith.constant 0 : index
    %10 = vector.load %arg1[%c0_2, %c0_3] : memref<1x1xf32, #tpu.memory_space<vmem>>, vector<1x1xf32>
    tpu.vector_store %arg1[%c0_2, %c0_3], %9 {strides = array<i32>} : memref<1x1xf32, #tpu.memory_space<vmem>>, vector<1x1xf32>,
    return
  }
}

</mosaic_0001>

<llo_original>
// kernel: tpu_custom_call.1
$region0: #{tpu_custom_call.1}
  #allocation0 [shape = 'u32[]', space=smem, size = 0x4, offset = 0x4, fixed_abs, tag = 'smem constant byte address 0x4 - core index']
  #allocation1 [shape = 'u32[144,128]{1,0:T(1,128)}', space=vmem, size = 0x12000, scoped, tag = 'internal scratch']
  #allocation2 [shape = 'f32[1,1]{1,0:T(1,128)S(6)}', space=smem, size = 0x200, scoped, tag = 'scoped memory for tpu_custom_call.1']
  %s0 = inlined_call_operand.<no memory space> [shape: f32[1,1], index: 0, kind: input, shape index: {}]
  %s1 = inlined_call_operand.hbm [shape: f32[1,1], index: 1, kind: output, shape index: {}]
  %s2 = sld [smem:[#allocation0]]
  $region14: #{tpu_custom_call.1} parent=0
    _
  %s4 = ssub.s32 1, %s2
  %s5 = scalar_select 0, %s4, %s2
  %6 = sst [smem:[#allocation2]] %s0
  $region1: #{tpu_custom_call.1} parent=0
    #allocation3 [shape = 'u8[512]{0}', space=vmem, size = 0x400, scoped, tag = 'output window, operand 0, single buffered']
    #allocation4 [shape = 's32[1]{0}', space=sflag, size = 0x4, scoped, tag = 'scoped memory for tpu_custom_call.1']
    %7 = vsyncpa [#allocation4], 0
    // Predicated region
    $region2: #{tpu_custom_call.1} parent=1 // pred_check
      _
    $region3: #{tpu_custom_call.1} parent=1 // pred_check_branch
      %9 = sbr.rel (0) target = $region5
    $region4: #{tpu_custom_call.1} parent=1 // pred_region
      _
    $region5: #{tpu_custom_call.1} parent=1 // pred_fallthru
      _
    %s10 = sld [smem:[#allocation2]]
    %v11 = vstv %s10
    %v12 = vmax.f32 %v11, 0.0
    %v13 = vand.u32 2147483647, %v11
    %v14 = vsub.f32 0.0, %v13
    %v15 = vmul.f32 %v14, 1.442695
    %v16 = vpow.pop %v15
    %v17 = vadd.f32 %v16, 1.0
    %v18 = vlog2.pop %v17
    %v19 = vmul.f32 %v18, 0.6931472
    %v20 = vmul.f32 -0.5, %v16
    %v21 = vadd.f32 %v20, 1.0
    %v22 = vmul.f32 %v21, %v16
    %v23 = vand.u32 2147483647, %v16
    %vm24 = vcmp.lt.f32.partialorder %v23, 0.0004427343
    %v25 = vsel %vm24, %v22, %v19
    %v26 = vadd.f32 %v12, %v25
    %vm27 = vcmask 0
    %28 = vst.msk [vmem:[#allocation3] sm:$0x1] %vm27, %v26
    // Predicated region
    $region6: #{tpu_custom_call.1} parent=1 // pred_check
      _
    $region7: #{tpu_custom_call.1} parent=1 // pred_check_branch
      %30 = sbr.rel (0) target = $region9
    $region8: #{tpu_custom_call.1} parent=1 // pred_region
      %s32 = ssub.s32 16, 16
      %33 = vsyncadd [#allocation4], %s32
      %s35 = sshll.u32 [#allocation3], 4
      %s36 = int_to_ptr.vmem [resolvable:$true] %s35
      %38 = dma.vmem_to_hbm [thread:$0]  %s36, 16, %s1, [#allocation4]
    $region9: #{tpu_custom_call.1} parent=1 // pred_fallthru
      _
    // Predicated region
    $region10: #{tpu_custom_call.1} parent=1 // pred_check
      _
    $region11: #{tpu_custom_call.1} parent=1 // pred_check_branch
      %40 = sbr.rel (0) target = $region13
    $region12: #{tpu_custom_call.1} parent=1 // pred_region
      %41 = dma.done [#allocation4], 16
    $region13: #{tpu_custom_call.1} parent=1 // pred_fallthru
      _
    %42 = vsyncpa [#allocation4], 1

</llo_original>
